<compile_context>
chip_gen: v6e
topology: v6e:2x2x1
jax: 0.10.0
libtpu: 0.0.40
codegen_flags: <defaults>
</compile_context>

<pallas_src>
import jax
import jax.numpy as jnp
from jax.experimental import pallas as pl
from jax.experimental.pallas import tpu as pltpu

N, H, W = 2, 16, 16
C = 64                 # in_channels
REDUCTION = 16
MID = C // REDUCTION   # 4
PROWS = 16             # packed parameter rows (3*MID + 1 = 13, padded to 16 sublanes)


def se_kernel(x_ref, p_ref, o_ref):
    # x_ref / o_ref: (N*H, W*C) lane-dense slab (row = n*H + h, col = w*C + c).
    # p_ref: (PROWS, W*C) packed parameters, pre-tiled across the W lane groups:
    #   rows [0, MID)        a1[m, j] = W1[m, j % C] / (H*W)    (fc1 weight, pool scale folded in)
    #   rows [MID, 2*MID)    c1[m, j] = b1[m] / (W*C)           (fc1 bias, folded into lane reduce)
    #   rows [2*MID, 3*MID)  a2[m, j] = W2[j % C, m]            (fc2 weight, transposed + tiled)
    #   row  3*MID           b2[j % C]                          (fc2 bias, tiled)
    p = p_ref[...]
    a1 = p[0:MID, :]
    c1 = p[MID:2 * MID, :]
    a2 = p[2 * MID:3 * MID, :]
    b2row = p[3 * MID:3 * MID + 1, :]

    for n in range(N):  # static unroll over batch; single grid step, whole slab resident
        xn = x_ref[n * H:(n + 1) * H, :].astype(jnp.float32)           # (H, W*C)

        # --- squeeze: column sum over H; the fold over W lane groups is absorbed by fc1 ---
        s = jnp.sum(xn, axis=0, keepdims=True)                         # (1, W*C)

        # --- excitation fc1 + ReLU:  y1[m] = relu(sum_c pooled[c]*W1[m,c] + b1[m]) ---
        y1 = jnp.maximum(jnp.sum(s * a1 + c1, axis=1, keepdims=True), 0.0)   # (MID, 1)

        # --- excitation fc2 + sigmoid, produced directly as a replicated (1, W*C) row ---
        z2 = jnp.sum(y1 * a2, axis=0, keepdims=True) + b2row           # (1, W*C)
        scale = jax.nn.sigmoid(z2)                                     # (1, W*C)

        # --- re-scale: broadcast over H sublanes; one unmasked lane-dense store ---
        o_ref[n * H:(n + 1) * H, :] = (xn * scale).astype(o_ref.dtype)


def _pack_params(w1, b1, w2, b2):
    """w1: (MID, C) fc1 weight (out,in); b1: (MID,); w2: (C, MID) fc2 weight (out,in); b2: (C,)."""
    a1 = jnp.tile(w1.astype(jnp.float32), (1, W)) / float(H * W)                    # (MID, W*C)
    c1 = jnp.tile(b1.astype(jnp.float32).reshape(MID, 1), (1, W * C)) / float(W * C)
    a2 = jnp.tile(w2.astype(jnp.float32).T, (1, W))                                  # (MID, W*C)
    b2r = jnp.tile(b2.astype(jnp.float32).reshape(1, C), (1, W))                     # (1, W*C)
    packed = jnp.concatenate([a1, c1, a2, b2r], axis=0)                              # (13, W*C)
    return jnp.pad(packed, ((0, PROWS - packed.shape[0]), (0, 0)))                   # (16, W*C)


def squeeze_excitation(x_nchw, w1, b1, w2, b2):
    """Forward pass of SqueezeExcitation; x_nchw: (N, C, H, W) as in the PyTorch module."""
    # Layout plumbing (outside the kernel): NCHW -> NHWC -> lane-dense (N*H, W*C) slab.
    x_nhwc = jnp.transpose(x_nchw, (0, 2, 3, 1))
    x2d = x_nhwc.reshape(N * H, W * C)
    params = _pack_params(w1, b1, w2, b2)

    dtype_bytes = jnp.dtype(x_nchw.dtype).itemsize
    cost = pl.CostEstimate(
        flops=4 * N * H * W * C,
        transcendentals=N * W * C,
        bytes_accessed=2 * N * H * W * C * dtype_bytes + PROWS * W * C * 4,
    )

    out2d = pl.pallas_call(
        se_kernel,
        out_shape=jax.ShapeDtypeStruct((N * H, W * C), x_nchw.dtype),
        grid=(1,),  # single step: whole 128 KiB slab + 64 KiB params fit VMEM easily
        in_specs=[
            pl.BlockSpec((N * H, W * C), lambda i: (0, 0)),
            pl.BlockSpec((PROWS, W * C), lambda i: (0, 0)),
        ],
        out_specs=pl.BlockSpec((N * H, W * C), lambda i: (0, 0)),
        compiler_params=pltpu.CompilerParams(dimension_semantics=("arbitrary",)),
        cost_estimate=cost,
    )(x2d, params)

    out = out2d.reshape(N, H, W, C)
    return jnp.transpose(out, (0, 3, 1, 2))


def reference_forward(x, w1, b1, w2, b2):
    """Pure-JAX NCHW reference mirroring the PyTorch forward()."""
    pooled = jnp.mean(x, axis=(2, 3))                                  # adaptive_avg_pool2d(x, 1)
    y1 = jax.nn.relu(pooled @ w1.T + b1[None, :])                      # fc1 (1x1 conv) + ReLU
    scale = jax.nn.sigmoid(y1 @ w2.T + b2[None, :])                    # fc2 (1x1 conv) + sigmoid
    return x * scale[:, :, None, None]                                 # channel-wise re-scale


if __name__ == "__main__":
    key = jax.random.PRNGKey(0)
    kx, k1, kb1, k2, kb2 = jax.random.split(key, 5)

    # Shapes from SqueezeExcitation(64, reduction=16), NCHW like PyTorch.
    x = jax.random.normal(kx, (N, C, H, W), jnp.float32)
    w1 = 0.1 * jax.random.normal(k1, (MID, C), jnp.float32)   # fc1 weight (out, in)
    b1 = 0.1 * jax.random.normal(kb1, (MID,), jnp.float32)    # fc1 bias
    w2 = 0.1 * jax.random.normal(k2, (C, MID), jnp.float32)   # fc2 weight (out, in)
    b2 = 0.1 * jax.random.normal(kb2, (C,), jnp.float32)      # fc2 bias

    out = jax.block_until_ready(squeeze_excitation(x, w1, b1, w2, b2))

    ref = reference_forward(x, w1, b1, w2, b2)
    assert out.shape == (N, C, H, W)
    max_err = jnp.max(jnp.abs(out - ref))
    assert jnp.allclose(out, ref, atol=1e-4, rtol=1e-4), f"max abs err {max_err}"

    print("KERNEL_OK")
</pallas_src>

<mosaic_0001>
module attributes {stable_mosaic.version = 11 : i64} {
  func.func @se_kernel(%arg0: i32, %arg1: memref<32x1024xf32, #tpu.memory_space<vmem>>, %arg2: memref<16x1024xf32, #tpu.memory_space<vmem>>, %arg3: memref<32x1024xf32, #tpu.memory_space<vmem>>) attributes {dimension_semantics = [#tpu.dimension_semantics<arbitrary>], iteration_bounds = array<i64: 1>, scalar_prefetch = 0 : i64, scratch_operands = 0 : i64, tpu.core_type = #tpu.core_type<tc>, window_params = [{pipeline_mode = #tpu.pipeline_mode<synchronous>, transform_indices = @transform_0, window_bounds = array<i64: 32, 1024>}, {pipeline_mode = #tpu.pipeline_mode<synchronous>, transform_indices = @transform_1, window_bounds = array<i64: 16, 1024>}, {pipeline_mode = #tpu.pipeline_mode<synchronous>, transform_indices = @transform_2, window_bounds = array<i64: 32, 1024>}]} {
    %c0 = arith.constant 0 : index
    %c0_0 = arith.constant 0 : index
    %0 = vector.load %arg2[%c0, %c0_0] : memref<16x1024xf32, #tpu.memory_space<vmem>>, vector<16x1024xf32>
    %1 = vector.extract_strided_slice %0 {offsets = [0, 0], sizes = [4, 1024], strides = [1, 1]} : vector<16x1024xf32> to vector<4x1024xf32>
    %2 = vector.extract_strided_slice %0 {offsets = [4, 0], sizes = [4, 1024], strides = [1, 1]} : vector<16x1024xf32> to vector<4x1024xf32>
    %3 = vector.extract_strided_slice %0 {offsets = [8, 0], sizes = [4, 1024], strides = [1, 1]} : vector<16x1024xf32> to vector<4x1024xf32>
    %4 = vector.extract_strided_slice %0 {offsets = [12, 0], sizes = [1, 1024], strides = [1, 1]} : vector<16x1024xf32> to vector<1x1024xf32>
    %c0_1 = arith.constant 0 : index
    %c0_2 = arith.constant 0 : index
    %5 = vector.load %arg1[%c0_1, %c0_2] : memref<32x1024xf32, #tpu.memory_space<vmem>>, vector<16x1024xf32>
    %cst = arith.constant dense<0.000000e+00> : vector<1024xf32>
    %6 = vector.multi_reduction <add>, %5, %cst [0] : vector<16x1024xf32> to vector<1024xf32>
    %7 = vector.shape_cast %6 : vector<1024xf32> to vector<1x1024xf32>
    %8 = vector.broadcast %7 : vector<1x1024xf32> to vector<4x1024xf32>
    %9 = arith.mulf %8, %1 : vector<4x1024xf32>
    %10 = arith.addf %9, %2 : vector<4x1024xf32>
    %cst_3 = arith.constant dense<0.000000e+00> : vector<4xf32>
    %11 = vector.multi_reduction <add>, %10, %cst_3 [1] : vector<4x1024xf32> to vector<4xf32>
    %12 = vector.shape_cast %11 : vector<4xf32> to vector<4x1xf32>
    %cst_4 = arith.constant 0.000000e+00 : f32
    %13 = vector.broadcast %cst_4 : f32 to vector<4x1xf32>
    %14 = arith.maximumf %12, %13 : vector<4x1xf32>
    %15 = vector.broadcast %14 : vector<4x1xf32> to vector<4x1024xf32>
    %16 = arith.mulf %15, %3 : vector<4x1024xf32>
    %cst_5 = arith.constant dense<0.000000e+00> : vector<1024xf32>
    %17 = vector.multi_reduction <add>, %16, %cst_5 [0] : vector<4x1024xf32> to vector<1024xf32>
    %18 = vector.shape_cast %17 : vector<1024xf32> to vector<1x1024xf32>
    %19 = arith.addf %18, %4 : vector<1x1024xf32>
    %20 = arith.negf %19 : vector<1x1024xf32>
    %21 = math.exp %20 : vector<1x1024xf32>
    %cst_6 = arith.constant 1.000000e+00 : f32
    %22 = vector.broadcast %cst_6 : f32 to vector<1x1024xf32>
    %23 = arith.addf %22, %21 : vector<1x1024xf32>
    %24 = arith.divf %22, %23 : vector<1x1024xf32>
    %25 = vector.broadcast %24 : vector<1x1024xf32> to vector<16x1024xf32>
    %26 = arith.mulf %5, %25 : vector<16x1024xf32>
    %c0_7 = arith.constant 0 : index
    %c0_8 = arith.constant 0 : index
    %27 = vector.load %arg3[%c0_7, %c0_8] : memref<32x1024xf32, #tpu.memory_space<vmem>>, vector<16x1024xf32>
    tpu.vector_store %arg3[%c0_7, %c0_8], %26 {strides = array<i32>} : memref<32x1024xf32, #tpu.memory_space<vmem>>, vector<16x1024xf32>,
    %c16 = arith.constant 16 : index
    %c0_9 = arith.constant 0 : index
    %28 = vector.load %arg1[%c16, %c0_9] : memref<32x1024xf32, #tpu.memory_space<vmem>>, vector<16x1024xf32>
    %cst_10 = arith.constant dense<0.000000e+00> : vector<1024xf32>
    %29 = vector.multi_reduction <add>, %28, %cst_10 [0] : vector<16x1024xf32> to vector<1024xf32>
    %30 = vector.shape_cast %29 : vector<1024xf32> to vector<1x1024xf32>
    %31 = vector.broadcast %30 : vector<1x1024xf32> to vector<4x1024xf32>
    %32 = arith.mulf %31, %1 : vector<4x1024xf32>
    %33 = arith.addf %32, %2 : vector<4x1024xf32>
    %cst_11 = arith.constant dense<0.000000e+00> : vector<4xf32>
    %34 = vector.multi_reduction <add>, %33, %cst_11 [1] : vector<4x1024xf32> to vector<4xf32>
    %35 = vector.shape_cast %34 : vector<4xf32> to vector<4x1xf32>
    %cst_12 = arith.constant 0.000000e+00 : f32
    %36 = vector.broadcast %cst_12 : f32 to vector<4x1xf32>
    %37 = arith.maximumf %35, %36 : vector<4x1xf32>
    %38 = vector.broadcast %37 : vector<4x1xf32> to vector<4x1024xf32>
    %39 = arith.mulf %38, %3 : vector<4x1024xf32>
    %cst_13 = arith.constant dense<0.000000e+00> : vector<1024xf32>
    %40 = vector.multi_reduction <add>, %39, %cst_13 [0] : vector<4x1024xf32> to vector<1024xf32>
    %41 = vector.shape_cast %40 : vector<1024xf32> to vector<1x1024xf32>
    %42 = arith.addf %41, %4 : vector<1x1024xf32>
    %43 = arith.negf %42 : vector<1x1024xf32>
    %44 = math.exp %43 : vector<1x1024xf32>
    %cst_14 = arith.constant 1.000000e+00 : f32
    %45 = vector.broadcast %cst_14 : f32 to vector<1x1024xf32>
    %46 = arith.addf %45, %44 : vector<1x1024xf32>
    %47 = arith.divf %45, %46 : vector<1x1024xf32>
    %48 = vector.broadcast %47 : vector<1x1024xf32> to vector<16x1024xf32>
    %49 = arith.mulf %28, %48 : vector<16x1024xf32>
    %c16_15 = arith.constant 16 : index
    %c0_16 = arith.constant 0 : index
    %50 = vector.load %arg3[%c16_15, %c0_16] : memref<32x1024xf32, #tpu.memory_space<vmem>>, vector<16x1024xf32>
    tpu.vector_store %arg3[%c16_15, %c0_16], %49 {strides = array<i32>} : memref<32x1024xf32, #tpu.memory_space<vmem>>, vector<16x1024xf32>,
    return
  }
  func.func @transform_0(%arg0: i32) -> (i32, i32) {
    %c0_i32 = arith.constant 0 : i32
    %c0_i32_0 = arith.constant 0 : i32
    %c0_i32_1 = arith.constant 0 : i32
    return %c0_i32, %c0_i32_0 : i32, i32
  }
  func.func @transform_1(%arg0: i32) -> (i32, i32) {
    %c0_i32 = arith.constant 0 : i32
    %c0_i32_0 = arith.constant 0 : i32
    %c0_i32_1 = arith.constant 0 : i32
    return %c0_i32, %c0_i32_0 : i32, i32
  }
  func.func @transform_2(%arg0: i32) -> (i32, i32) {
    %c0_i32 = arith.constant 0 : i32
    %c0_i32_0 = arith.constant 0 : i32
    %c0_i32_1 = arith.constant 0 : i32
    return %c0_i32, %c0_i32_0 : i32, i32
  }
}

</mosaic_0001>

<llo_original>
// kernel: tpu_custom_call.1
$region0: #{tpu_custom_call.1}
  #allocation0 [shape = 'u32[]', space=smem, size = 0x4, offset = 0x4, fixed_abs, tag = 'smem constant byte address 0x4 - core index']
  #allocation1 [shape = 'u32[144,128]{1,0:T(1,128)}', space=vmem, size = 0x12000, scoped, tag = 'internal scratch']
  %s0 = inlined_call_operand.hbm [shape: f32[32,1024], index: 0, kind: input, shape index: {}]
  %s1 = inlined_call_operand.hbm [shape: f32[16,1024], index: 1, kind: input, shape index: {}]
  %s2 = inlined_call_operand.hbm [shape: f32[32,1024], index: 2, kind: output, shape index: {}]
  %s3 = sld [smem:[#allocation0]]
  $region26: #{tpu_custom_call.1} parent=0
    _
  %s5 = ssub.s32 1, %s3
  %s6 = scalar_select 0, %s5, %s3
  $region1: #{tpu_custom_call.1} parent=0
    #allocation2 [shape = 'u8[131072]{0}', space=vmem, size = 0x20000, scoped, tag = 'input window, operand 0, single buffered']
    #allocation3 [shape = 's32[1]{0}', space=sflag, size = 0x4, scoped, tag = 'scoped memory for tpu_custom_call.1']
    #allocation4 [shape = 's32[1]{0}', space=sflag, size = 0x4, scoped, tag = 'scoped memory for tpu_custom_call.1']
    #allocation5 [shape = 'u8[65536]{0}', space=vmem, size = 0x10000, scoped, tag = 'input window, operand 1, single buffered']
    #allocation6 [shape = 's32[1]{0}', space=sflag, size = 0x4, scoped, tag = 'scoped memory for tpu_custom_call.1']
    #allocation7 [shape = 'u8[131072]{0}', space=vmem, size = 0x20000, scoped, tag = 'output window, operand 0, single buffered']
    %7 = vsyncpa [#allocation3], 0
    %8 = vsyncpa [#allocation6], 0
    %9 = vsyncpa [#allocation4], 0
    // Predicated region
    $region2: #{tpu_custom_call.1} parent=1 // pred_check
      _
    $region3: #{tpu_custom_call.1} parent=1 // pred_check_branch
      %11 = sbr.rel (0) target = $region5
    $region4: #{tpu_custom_call.1} parent=1 // pred_region
      %s13 = ssub.s32 4096, 4096
      %14 = vsyncadd [#allocation3], %s13
      %s15 = sshll.u32 [#allocation2], 4
      %s16 = int_to_ptr.vmem [resolvable:$true] %s15
      %21 = dma.hbm_to_vmem [thread:$0]  %s0, 4096, %s16, [#allocation3], 1024, 1024, 64
    $region5: #{tpu_custom_call.1} parent=1 // pred_fallthru
      _
    // Predicated region
    $region6: #{tpu_custom_call.1} parent=1 // pred_check
      _
    $region7: #{tpu_custom_call.1} parent=1 // pred_check_branch
      %23 = sbr.rel (0) target = $region9
    $region8: #{tpu_custom_call.1} parent=1 // pred_region
      %s25 = ssub.s32 2048, 2048
      %26 = vsyncadd [#allocation6], %s25
      %s27 = sshll.u32 [#allocation5], 4
      %s28 = int_to_ptr.vmem [resolvable:$true] %s27
      %33 = dma.hbm_to_vmem [thread:$0]  %s1, 2048, %s28, [#allocation6], 1024, 1024, 64
    $region9: #{tpu_custom_call.1} parent=1 // pred_fallthru
      _
    // Predicated region
    $region10: #{tpu_custom_call.1} parent=1 // pred_check
      _
    $region11: #{tpu_custom_call.1} parent=1 // pred_check_branch
      %35 = sbr.rel (0) target = $region13
    $region12: #{tpu_custom_call.1} parent=1 // pred_region
      %36 = dma.done [#allocation3], 4096
    $region13: #{tpu_custom_call.1} parent=1 // pred_fallthru
      _
    // Predicated region
    $region14: #{tpu_custom_call.1} parent=1 // pred_check
      _
    $region15: #{tpu_custom_call.1} parent=1 // pred_check_branch
      %38 = sbr.rel (0) target = $region17
    $region16: #{tpu_custom_call.1} parent=1 // pred_region
      %39 = dma.done [#allocation6], 2048
    $region17: #{tpu_custom_call.1} parent=1 // pred_fallthru
      _
    %v40 = vld [vmem:[#allocation5] sm:$0xff]
    %v41 = vld [vmem:[#allocation5 + $0x8] sm:$0xff]
    %v42 = vld [vmem:[#allocation5 + $0x10] sm:$0xff]
    %v43 = vld [vmem:[#allocation5 + $0x18] sm:$0xff]
    %v44 = vld [vmem:[#allocation5 + $0x20] sm:$0xff]
    %v45 = vld [vmem:[#allocation5 + $0x28] sm:$0xff]
    %v46 = vld [vmem:[#allocation5 + $0x30] sm:$0xff]
    %v47 = vld [vmem:[#allocation5 + $0x38] sm:$0xff]
    %v48 = vld [vmem:[#allocation5 + $0x40] sm:$0xff]
    %v49 = vld [vmem:[#allocation5 + $0x48] sm:$0xff]
    %v50 = vld [vmem:[#allocation5 + $0x50] sm:$0xff]
    %v51 = vld [vmem:[#allocation5 + $0x58] sm:$0xff]
    %v52 = vld [vmem:[#allocation5 + $0x60] sm:$0xff]
    %v53 = vld [vmem:[#allocation5 + $0x68] sm:$0xff]
    %v54 = vld [vmem:[#allocation5 + $0x70] sm:$0xff]
    %v55 = vld [vmem:[#allocation5 + $0x78] sm:$0xff]
    %v56 = vld [vmem:[#allocation2] sm:$0xff]
    %v57 = vld [vmem:[#allocation2 + $0x8] sm:$0xff]
    %v58 = vld [vmem:[#allocation2 + $0x10] sm:$0xff]
    %v59 = vld [vmem:[#allocation2 + $0x18] sm:$0xff]
    %v60 = vld [vmem:[#allocation2 + $0x20] sm:$0xff]
    %v61 = vld [vmem:[#allocation2 + $0x28] sm:$0xff]
    %v62 = vld [vmem:[#allocation2 + $0x30] sm:$0xff]
    %v63 = vld [vmem:[#allocation2 + $0x38] sm:$0xff]
    %v64 = vld [vmem:[#allocation2 + $0x40] sm:$0xff]
    %v65 = vld [vmem:[#allocation2 + $0x48] sm:$0xff]
    %v66 = vld [vmem:[#allocation2 + $0x50] sm:$0xff]
    %v67 = vld [vmem:[#allocation2 + $0x58] sm:$0xff]
    %v68 = vld [vmem:[#allocation2 + $0x60] sm:$0xff]
    %v69 = vld [vmem:[#allocation2 + $0x68] sm:$0xff]
    %v70 = vld [vmem:[#allocation2 + $0x70] sm:$0xff]
    %v71 = vld [vmem:[#allocation2 + $0x78] sm:$0xff]
    %v72 = vadd.f32 %v56, %v64
    %v73 = vrot.slane %v72, 4
    %v74 = vadd.f32 %v72, %v73
    %v75 = vrot.slane %v74, 2
    %v76 = vadd.f32 %v74, %v75
    %v77 = vrot.slane %v76, 1
    %v78 = vadd.f32 %v76, %v77
    %v79 = vadd.f32 %v57, %v65
    %v80 = vrot.slane %v79, 4
    %v81 = vadd.f32 %v79, %v80
    %v82 = vrot.slane %v81, 2
    %v83 = vadd.f32 %v81, %v82
    %v84 = vrot.slane %v83, 1
    %v85 = vadd.f32 %v83, %v84
    %v86 = vadd.f32 %v58, %v66
    %v87 = vrot.slane %v86, 4
    %v88 = vadd.f32 %v86, %v87
    %v89 = vrot.slane %v88, 2
    %v90 = vadd.f32 %v88, %v89
    %v91 = vrot.slane %v90, 1
    %v92 = vadd.f32 %v90, %v91
    %v93 = vadd.f32 %v59, %v67
    %v94 = vrot.slane %v93, 4
    %v95 = vadd.f32 %v93, %v94
    %v96 = vrot.slane %v95, 2
    %v97 = vadd.f32 %v95, %v96
    %v98 = vrot.slane %v97, 1
    %v99 = vadd.f32 %v97, %v98
    %v100 = vadd.f32 %v60, %v68
    %v101 = vrot.slane %v100, 4
    %v102 = vadd.f32 %v100, %v101
    %v103 = vrot.slane %v102, 2
    %v104 = vadd.f32 %v102, %v103
    %v105 = vrot.slane %v104, 1
    %v106 = vadd.f32 %v104, %v105
    %v107 = vadd.f32 %v61, %v69
    %v108 = vrot.slane %v107, 4
    %v109 = vadd.f32 %v107, %v108
    %v110 = vrot.slane %v109, 2
    %v111 = vadd.f32 %v109, %v110
    %v112 = vrot.slane %v111, 1
    %v113 = vadd.f32 %v111, %v112
    %v114 = vadd.f32 %v62, %v70
    %v115 = vrot.slane %v114, 4
    %v116 = vadd.f32 %v114, %v115
    %v117 = vrot.slane %v116, 2
    %v118 = vadd.f32 %v116, %v117
    %v119 = vrot.slane %v118, 1
    %v120 = vadd.f32 %v118, %v119
    %v121 = vadd.f32 %v63, %v71
    %v122 = vrot.slane %v121, 4
    %v123 = vadd.f32 %v121, %v122
    %v124 = vrot.slane %v123, 2
    %v125 = vadd.f32 %v123, %v124
    %v126 = vrot.slane %v125, 1
    %v127 = vadd.f32 %v125, %v126
    %v128 = vmul.f32 %v78, %v40
    %v129 = vmul.f32 %v85, %v41
    %v130 = vmul.f32 %v92, %v42
    %v131 = vmul.f32 %v99, %v43
    %v132 = vmul.f32 %v106, %v44
    %v133 = vmul.f32 %v113, %v45
    %v134 = vmul.f32 %v120, %v46
    %v135 = vmul.f32 %v127, %v47
    %v144 = vrot.slane %v40, 4
    %v145 = vrot.slane %v41, 4
    %v146 = vrot.slane %v42, 4
    %v147 = vrot.slane %v43, 4
    %v148 = vrot.slane %v44, 4
    %v149 = vrot.slane %v45, 4
    %v150 = vrot.slane %v46, 4
    %v151 = vrot.slane %v47, 4
    %v160 = vadd.f32 %v128, %v144
    %v161 = vadd.f32 %v129, %v145
    %v162 = vadd.f32 %v130, %v146
    %v163 = vadd.f32 %v131, %v147
    %v164 = vadd.f32 %v132, %v148
    %v165 = vadd.f32 %v133, %v149
    %v166 = vadd.f32 %v134, %v150
    %v167 = vadd.f32 %v135, %v151
    %vm168 = vcmask 1043456
    %v169 = vsel %vm168, %v160, 0.0
    %v170 = vsel %vm168, %v161, 0.0
    %v171 = vadd.f32 %v169, %v170
    %v172 = vsel %vm168, %v162, 0.0
    %v173 = vadd.f32 %v171, %v172
    %v174 = vsel %vm168, %v163, 0.0
    %v175 = vadd.f32 %v173, %v174
    %v176 = vsel %vm168, %v164, 0.0
    %v177 = vadd.f32 %v175, %v176
    %v178 = vsel %vm168, %v165, 0.0
    %v179 = vadd.f32 %v177, %v178
    %v180 = vsel %vm168, %v166, 0.0
    %v181 = vadd.f32 %v179, %v180
    %v182 = vsel %vm168, %v167, 0.0
    %v183 = vadd.f32 %v181, %v182
    %184 = vadd.xlane.f32.xlu0 %v183
    %v185 = vpop.xlane.xlu0 %184
    %v186 = vmax.f32 %v185, 0.0
    %v187 = vmul.f32 %v186, %v48
    %v188 = vmul.f32 %v186, %v49
    %v189 = vmul.f32 %v186, %v50
    %v190 = vmul.f32 %v186, %v51
    %v191 = vmul.f32 %v186, %v52
    %v192 = vmul.f32 %v186, %v53
    %v193 = vmul.f32 %v186, %v54
    %v194 = vmul.f32 %v186, %v55
    %v195 = vsel %vm168, %v187, 0.0
    %v196 = vrot.slane %v195, 4
    %v197 = vadd.f32 %v195, %v196
    %v198 = vrot.slane %v197, 2
    %v199 = vadd.f32 %v197, %v198
    %v200 = vrot.slane %v199, 1
    %v201 = vadd.f32 %v199, %v200
    %v202 = vsel %vm168, %v188, 0.0
    %v203 = vrot.slane %v202, 4
    %v204 = vadd.f32 %v202, %v203
    %v205 = vrot.slane %v204, 2
    %v206 = vadd.f32 %v204, %v205
    %v207 = vrot.slane %v206, 1
    %v208 = vadd.f32 %v206, %v207
    %v209 = vsel %vm168, %v189, 0.0
    %v210 = vrot.slane %v209, 4
    %v211 = vadd.f32 %v209, %v210
    %v212 = vrot.slane %v211, 2
    %v213 = vadd.f32 %v211, %v212
    %v214 = vrot.slane %v213, 1
    %v215 = vadd.f32 %v213, %v214
    %v216 = vsel %vm168, %v190, 0.0
    %v217 = vrot.slane %v216, 4
    %v218 = vadd.f32 %v216, %v217
    %v219 = vrot.slane %v218, 2
    %v220 = vadd.f32 %v218, %v219
    %v221 = vrot.slane %v220, 1
    %v222 = vadd.f32 %v220, %v221
    %v223 = vsel %vm168, %v191, 0.0
    %v224 = vrot.slane %v223, 4
    %v225 = vadd.f32 %v223, %v224
    %v226 = vrot.slane %v225, 2
    %v227 = vadd.f32 %v225, %v226
    %v228 = vrot.slane %v227, 1
    %v229 = vadd.f32 %v227, %v228
    %v230 = vsel %vm168, %v192, 0.0
    %v231 = vrot.slane %v230, 4
    %v232 = vadd.f32 %v230, %v231
    %v233 = vrot.slane %v232, 2
    %v234 = vadd.f32 %v232, %v233
    %v235 = vrot.slane %v234, 1
    %v236 = vadd.f32 %v234, %v235
    %v237 = vsel %vm168, %v193, 0.0
    %v238 = vrot.slane %v237, 4
    %v239 = vadd.f32 %v237, %v238
    %v240 = vrot.slane %v239, 2
    %v241 = vadd.f32 %v239, %v240
    %v242 = vrot.slane %v241, 1
    %v243 = vadd.f32 %v241, %v242
    %v244 = vsel %vm168, %v194, 0.0
    %v245 = vrot.slane %v244, 4
    %v246 = vadd.f32 %v244, %v245
    %v247 = vrot.slane %v246, 2
    %v248 = vadd.f32 %v246, %v247
    %v249 = vrot.slane %v248, 1
    %v250 = vadd.f32 %v248, %v249
    %v251 = vadd.f32 %v201, %v48
    %v252 = vadd.f32 %v208, %v49
    %v253 = vadd.f32 %v215, %v50
    %v254 = vadd.f32 %v222, %v51
    %v255 = vadd.f32 %v229, %v52
    %v256 = vadd.f32 %v236, %v53
    %v257 = vadd.f32 %v243, %v54
    %v258 = vadd.f32 %v250, %v55
    %v259 = vxor.u32 %v251, 2147483648
    %v260 = vxor.u32 %v252, 2147483648
    %v261 = vxor.u32 %v253, 2147483648
    %v262 = vxor.u32 %v254, 2147483648
    %v263 = vxor.u32 %v255, 2147483648
    %v264 = vxor.u32 %v256, 2147483648
    %v265 = vxor.u32 %v257, 2147483648
    %v266 = vxor.u32 %v258, 2147483648
    %v267 = vmul.f32 %v259, 1.442695
    %v268 = vpow.pop %v267
    %v269 = vmul.f32 %v260, 1.442695
    %v270 = vpow.pop %v269
    %v271 = vmul.f32 %v261, 1.442695
    %v272 = vpow.pop %v271
    %v273 = vmul.f32 %v262, 1.442695
    %v274 = vpow.pop %v273
    %v275 = vmul.f32 %v263, 1.442695
    %v276 = vpow.pop %v275
    %v277 = vmul.f32 %v264, 1.442695
    %v278 = vpow.pop %v277
    %v279 = vmul.f32 %v265, 1.442695
    %v280 = vpow.pop %v279
    %v281 = vmul.f32 %v266, 1.442695
    %v282 = vpow.pop %v281
    %v283 = vadd.f32 %v268, 1.0
    %v284 = vadd.f32 %v270, 1.0
    %v285 = vadd.f32 %v272, 1.0
    %v286 = vadd.f32 %v274, 1.0
    %v287 = vadd.f32 %v276, 1.0
    %v288 = vadd.f32 %v278, 1.0
    %v289 = vadd.f32 %v280, 1.0
    %v290 = vadd.f32 %v282, 1.0
    %v291 = vrcp.pop %v283
    %v292 = vmul.f32 1.0, %v291
    %v293 = vrcp.pop %v284
    %v294 = vmul.f32 1.0, %v293
    %v295 = vrcp.pop %v285
    %v296 = vmul.f32 1.0, %v295
    %v297 = vrcp.pop %v286
    %v298 = vmul.f32 1.0, %v297
    %v299 = vrcp.pop %v287
    %v300 = vmul.f32 1.0, %v299
    %v301 = vrcp.pop %v288
    %v302 = vmul.f32 1.0, %v301
    %v303 = vrcp.pop %v289
    %v304 = vmul.f32 1.0, %v303
    %v305 = vrcp.pop %v290
    %v306 = vmul.f32 1.0, %v305
    %v307 = vlaneseq
    %v308 = vshrl.u32 %v307, 7
    %v309 = vsub.s32 4, %v308
    %v310 = vrot.slane %v292, %v309
    %v311 = vlaneseq
    %v312 = vshrl.u32 %v311, 7
    %v313 = vsub.s32 4, %v312
    %v314 = vrot.slane %v294, %v313
    %v315 = vlaneseq
    %v316 = vshrl.u32 %v315, 7
    %v317 = vsub.s32 4, %v316
    %v318 = vrot.slane %v296, %v317
    %v319 = vlaneseq
    %v320 = vshrl.u32 %v319, 7
    %v321 = vsub.s32 4, %v320
    %v322 = vrot.slane %v298, %v321
    %v323 = vlaneseq
    %v324 = vshrl.u32 %v323, 7
    %v325 = vsub.s32 4, %v324
    %v326 = vrot.slane %v300, %v325
    %v327 = vlaneseq
    %v328 = vshrl.u32 %v327, 7
    %v329 = vsub.s32 4, %v328
    %v330 = vrot.slane %v302, %v329
    %v331 = vlaneseq
    %v332 = vshrl.u32 %v331, 7
    %v333 = vsub.s32 4, %v332
    %v334 = vrot.slane %v304, %v333
    %v335 = vlaneseq
    %v336 = vshrl.u32 %v335, 7
    %v337 = vsub.s32 4, %v336
    %v338 = vrot.slane %v306, %v337
    %v339 = vmul.f32 %v56, %v310
    %v340 = vmul.f32 %v57, %v314
    %v341 = vmul.f32 %v58, %v318
    %v342 = vmul.f32 %v59, %v322
    %v343 = vmul.f32 %v60, %v326
    %v344 = vmul.f32 %v61, %v330
    %v345 = vmul.f32 %v62, %v334
    %v346 = vmul.f32 %v63, %v338
    %v347 = vmul.f32 %v64, %v310
    %v348 = vmul.f32 %v65, %v314
    %v349 = vmul.f32 %v66, %v318
    %v350 = vmul.f32 %v67, %v322
    %v351 = vmul.f32 %v68, %v326
    %v352 = vmul.f32 %v69, %v330
    %v353 = vmul.f32 %v70, %v334
    %v354 = vmul.f32 %v71, %v338
    %355 = vst [vmem:[#allocation7] sm:$0xff] %v339
    %356 = vst [vmem:[#allocation7 + $0x8] sm:$0xff] %v340
    %357 = vst [vmem:[#allocation7 + $0x10] sm:$0xff] %v341
    %358 = vst [vmem:[#allocation7 + $0x18] sm:$0xff] %v342
    %359 = vst [vmem:[#allocation7 + $0x20] sm:$0xff] %v343
    %360 = vst [vmem:[#allocation7 + $0x28] sm:$0xff] %v344
    %361 = vst [vmem:[#allocation7 + $0x30] sm:$0xff] %v345
    %362 = vst [vmem:[#allocation7 + $0x38] sm:$0xff] %v346
    %363 = vst [vmem:[#allocation7 + $0x40] sm:$0xff] %v347
    %364 = vst [vmem:[#allocation7 + $0x48] sm:$0xff] %v348
    %365 = vst [vmem:[#allocation7 + $0x50] sm:$0xff] %v349
    %366 = vst [vmem:[#allocation7 + $0x58] sm:$0xff] %v350
    %367 = vst [vmem:[#allocation7 + $0x60] sm:$0xff] %v351
    %368 = vst [vmem:[#allocation7 + $0x68] sm:$0xff] %v352
    %369 = vst [vmem:[#allocation7 + $0x70] sm:$0xff] %v353
    %370 = vst [vmem:[#allocation7 + $0x78] sm:$0xff] %v354
    %v371 = vld [vmem:[#allocation2 + $0x80] sm:$0xff]
    %v372 = vld [vmem:[#allocation2 + $0x88] sm:$0xff]
    %v373 = vld [vmem:[#allocation2 + $0x90] sm:$0xff]
    %v374 = vld [vmem:[#allocation2 + $0x98] sm:$0xff]
    %v375 = vld [vmem:[#allocation2 + $0xa0] sm:$0xff]
    %v376 = vld [vmem:[#allocation2 + $0xa8] sm:$0xff]
    %v377 = vld [vmem:[#allocation2 + $0xb0] sm:$0xff]
    %v378 = vld [vmem:[#allocation2 + $0xb8] sm:$0xff]
    %v379 = vld [vmem:[#allocation2 + $0xc0] sm:$0xff]
    %v380 = vld [vmem:[#allocation2 + $0xc8] sm:$0xff]
    %v381 = vld [vmem:[#allocation2 + $0xd0] sm:$0xff]
    %v382 = vld [vmem:[#allocation2 + $0xd8] sm:$0xff]
    %v383 = vld [vmem:[#allocation2 + $0xe0] sm:$0xff]
    %v384 = vld [vmem:[#allocation2 + $0xe8] sm:$0xff]
    %v385 = vld [vmem:[#allocation2 + $0xf0] sm:$0xff]
    %v386 = vld [vmem:[#allocation2 + $0xf8] sm:$0xff]
    %v387 = vadd.f32 %v371, %v379
    %v388 = vrot.slane %v387, 4
    %v389 = vadd.f32 %v387, %v388
    %v390 = vrot.slane %v389, 2
    %v391 = vadd.f32 %v389, %v390
    %v392 = vrot.slane %v391, 1
    %v393 = vadd.f32 %v391, %v392
    %v394 = vadd.f32 %v372, %v380
    %v395 = vrot.slane %v394, 4
    %v396 = vadd.f32 %v394, %v395
    %v397 = vrot.slane %v396, 2
    %v398 = vadd.f32 %v396, %v397
    %v399 = vrot.slane %v398, 1
    %v400 = vadd.f32 %v398, %v399
    %v401 = vadd.f32 %v373, %v381
    %v402 = vrot.slane %v401, 4
    %v403 = vadd.f32 %v401, %v402
    %v404 = vrot.slane %v403, 2
    %v405 = vadd.f32 %v403, %v404
    %v406 = vrot.slane %v405, 1
    %v407 = vadd.f32 %v405, %v406
    %v408 = vadd.f32 %v374, %v382
    %v409 = vrot.slane %v408, 4
    %v410 = vadd.f32 %v408, %v409
    %v411 = vrot.slane %v410, 2
    %v412 = vadd.f32 %v410, %v411
    %v413 = vrot.slane %v412, 1
    %v414 = vadd.f32 %v412, %v413
    %v415 = vadd.f32 %v375, %v383
    %v416 = vrot.slane %v415, 4
    %v417 = vadd.f32 %v415, %v416
    %v418 = vrot.slane %v417, 2
    %v419 = vadd.f32 %v417, %v418
    %v420 = vrot.slane %v419, 1
    %v421 = vadd.f32 %v419, %v420
    %v422 = vadd.f32 %v376, %v384
    %v423 = vrot.slane %v422, 4
    %v424 = vadd.f32 %v422, %v423
    %v425 = vrot.slane %v424, 2
    %v426 = vadd.f32 %v424, %v425
    %v427 = vrot.slane %v426, 1
    %v428 = vadd.f32 %v426, %v427
    %v429 = vadd.f32 %v377, %v385
    %v430 = vrot.slane %v429, 4
    %v431 = vadd.f32 %v429, %v430
    %v432 = vrot.slane %v431, 2
    %v433 = vadd.f32 %v431, %v432
    %v434 = vrot.slane %v433, 1
    %v435 = vadd.f32 %v433, %v434
    %v436 = vadd.f32 %v378, %v386
    %v437 = vrot.slane %v436, 4
    %v438 = vadd.f32 %v436, %v437
    %v439 = vrot.slane %v438, 2
    %v440 = vadd.f32 %v438, %v439
    %v441 = vrot.slane %v440, 1
    %v442 = vadd.f32 %v440, %v441
    %v443 = vmul.f32 %v393, %v40
    %v444 = vmul.f32 %v400, %v41
    %v445 = vmul.f32 %v407, %v42
    %v446 = vmul.f32 %v414, %v43
    %v447 = vmul.f32 %v421, %v44
    %v448 = vmul.f32 %v428, %v45
    %v449 = vmul.f32 %v435, %v46
    %v450 = vmul.f32 %v442, %v47
    %v451 = vadd.f32 %v443, %v144
    %v452 = vadd.f32 %v444, %v145
    %v453 = vadd.f32 %v445, %v146
    %v454 = vadd.f32 %v446, %v147
    %v455 = vadd.f32 %v447, %v148
    %v456 = vadd.f32 %v448, %v149
    %v457 = vadd.f32 %v449, %v150
    %v458 = vadd.f32 %v450, %v151
    %v459 = vsel %vm168, %v451, 0.0
    %v460 = vsel %vm168, %v452, 0.0
    %v461 = vadd.f32 %v459, %v460
    %v462 = vsel %vm168, %v453, 0.0
    %v463 = vadd.f32 %v461, %v462
    %v464 = vsel %vm168, %v454, 0.0
    %v465 = vadd.f32 %v463, %v464
    %v466 = vsel %vm168, %v455, 0.0
    %v467 = vadd.f32 %v465, %v466
    %v468 = vsel %vm168, %v456, 0.0
    %v469 = vadd.f32 %v467, %v468
    %v470 = vsel %vm168, %v457, 0.0
    %v471 = vadd.f32 %v469, %v470
    %v472 = vsel %vm168, %v458, 0.0
    %v473 = vadd.f32 %v471, %v472
    %474 = vadd.xlane.f32.xlu0 %v473
    %v475 = vpop.xlane.xlu0 %474
    %v476 = vmax.f32 %v475, 0.0
    %v477 = vmul.f32 %v476, %v48
    %v478 = vmul.f32 %v476, %v49
    %v479 = vmul.f32 %v476, %v50
    %v480 = vmul.f32 %v476, %v51
    %v481 = vmul.f32 %v476, %v52
    %v482 = vmul.f32 %v476, %v53
    %v483 = vmul.f32 %v476, %v54
    %v484 = vmul.f32 %v476, %v55
    %v485 = vsel %vm168, %v477, 0.0
    %v486 = vrot.slane %v485, 4
    %v487 = vadd.f32 %v485, %v486
    %v488 = vrot.slane %v487, 2
    %v489 = vadd.f32 %v487, %v488
    %v490 = vrot.slane %v489, 1
    %v491 = vadd.f32 %v489, %v490
    %v492 = vsel %vm168, %v478, 0.0
    %v493 = vrot.slane %v492, 4
    %v494 = vadd.f32 %v492, %v493
    %v495 = vrot.slane %v494, 2
    %v496 = vadd.f32 %v494, %v495
    %v497 = vrot.slane %v496, 1
    %v498 = vadd.f32 %v496, %v497
    %v499 = vsel %vm168, %v479, 0.0
    %v500 = vrot.slane %v499, 4
    %v501 = vadd.f32 %v499, %v500
    %v502 = vrot.slane %v501, 2
    %v503 = vadd.f32 %v501, %v502
    %v504 = vrot.slane %v503, 1
    %v505 = vadd.f32 %v503, %v504
    %v506 = vsel %vm168, %v480, 0.0
    %v507 = vrot.slane %v506, 4
    %v508 = vadd.f32 %v506, %v507
    %v509 = vrot.slane %v508, 2
    %v510 = vadd.f32 %v508, %v509
    %v511 = vrot.slane %v510, 1
    %v512 = vadd.f32 %v510, %v511
    %v513 = vsel %vm168, %v481, 0.0
    %v514 = vrot.slane %v513, 4
    %v515 = vadd.f32 %v513, %v514
    %v516 = vrot.slane %v515, 2
    %v517 = vadd.f32 %v515, %v516
    %v518 = vrot.slane %v517, 1
    %v519 = vadd.f32 %v517, %v518
    %v520 = vsel %vm168, %v482, 0.0
    %v521 = vrot.slane %v520, 4
    %v522 = vadd.f32 %v520, %v521
    %v523 = vrot.slane %v522, 2
    %v524 = vadd.f32 %v522, %v523
    %v525 = vrot.slane %v524, 1
    %v526 = vadd.f32 %v524, %v525
    %v527 = vsel %vm168, %v483, 0.0
    %v528 = vrot.slane %v527, 4
    %v529 = vadd.f32 %v527, %v528
    %v530 = vrot.slane %v529, 2
    %v531 = vadd.f32 %v529, %v530
    %v532 = vrot.slane %v531, 1
    %v533 = vadd.f32 %v531, %v532
    %v534 = vsel %vm168, %v484, 0.0
    %v535 = vrot.slane %v534, 4
    %v536 = vadd.f32 %v534, %v535
    %v537 = vrot.slane %v536, 2
    %v538 = vadd.f32 %v536, %v537
    %v539 = vrot.slane %v538, 1
    %v540 = vadd.f32 %v538, %v539
    %v541 = vadd.f32 %v491, %v48
    %v542 = vadd.f32 %v498, %v49
    %v543 = vadd.f32 %v505, %v50
    %v544 = vadd.f32 %v512, %v51
    %v545 = vadd.f32 %v519, %v52
    %v546 = vadd.f32 %v526, %v53
    %v547 = vadd.f32 %v533, %v54
    %v548 = vadd.f32 %v540, %v55
    %v549 = vxor.u32 %v541, 2147483648
    %v550 = vxor.u32 %v542, 2147483648
    %v551 = vxor.u32 %v543, 2147483648
    %v552 = vxor.u32 %v544, 2147483648
    %v553 = vxor.u32 %v545, 2147483648
    %v554 = vxor.u32 %v546, 2147483648
    %v555 = vxor.u32 %v547, 2147483648
    %v556 = vxor.u32 %v548, 2147483648
    %v557 = vmul.f32 %v549, 1.442695
    %v558 = vpow.pop %v557
    %v559 = vmul.f32 %v550, 1.442695
    %v560 = vpow.pop %v559
    %v561 = vmul.f32 %v551, 1.442695
    %v562 = vpow.pop %v561
    %v563 = vmul.f32 %v552, 1.442695
    %v564 = vpow.pop %v563
    %v565 = vmul.f32 %v553, 1.442695
    %v566 = vpow.pop %v565
    %v567 = vmul.f32 %v554, 1.442695
    %v568 = vpow.pop %v567
    %v569 = vmul.f32 %v555, 1.442695
    %v570 = vpow.pop %v569
    %v571 = vmul.f32 %v556, 1.442695
    %v572 = vpow.pop %v571
    %v573 = vadd.f32 %v558, 1.0
    %v574 = vadd.f32 %v560, 1.0
    %v575 = vadd.f32 %v562, 1.0
    %v576 = vadd.f32 %v564, 1.0
    %v577 = vadd.f32 %v566, 1.0
    %v578 = vadd.f32 %v568, 1.0
    %v579 = vadd.f32 %v570, 1.0
    %v580 = vadd.f32 %v572, 1.0
    %v581 = vrcp.pop %v573
    %v582 = vmul.f32 1.0, %v581
    %v583 = vrcp.pop %v574
    %v584 = vmul.f32 1.0, %v583
    %v585 = vrcp.pop %v575
    %v586 = vmul.f32 1.0, %v585
    %v587 = vrcp.pop %v576
    %v588 = vmul.f32 1.0, %v587
    %v589 = vrcp.pop %v577
    %v590 = vmul.f32 1.0, %v589
    %v591 = vrcp.pop %v578
    %v592 = vmul.f32 1.0, %v591
    %v593 = vrcp.pop %v579
    %v594 = vmul.f32 1.0, %v593
    %v595 = vrcp.pop %v580
    %v596 = vmul.f32 1.0, %v595
    %v597 = vlaneseq
    %v598 = vshrl.u32 %v597, 7
    %v599 = vsub.s32 4, %v598
    %v600 = vrot.slane %v582, %v599
    %v601 = vlaneseq
    %v602 = vshrl.u32 %v601, 7
    %v603 = vsub.s32 4, %v602
    %v604 = vrot.slane %v584, %v603
    %v605 = vlaneseq
    %v606 = vshrl.u32 %v605, 7
    %v607 = vsub.s32 4, %v606
    %v608 = vrot.slane %v586, %v607
    %v609 = vlaneseq
    %v610 = vshrl.u32 %v609, 7
    %v611 = vsub.s32 4, %v610
    %v612 = vrot.slane %v588, %v611
    %v613 = vlaneseq
    %v614 = vshrl.u32 %v613, 7
    %v615 = vsub.s32 4, %v614
    %v616 = vrot.slane %v590, %v615
    %v617 = vlaneseq
    %v618 = vshrl.u32 %v617, 7
    %v619 = vsub.s32 4, %v618
    %v620 = vrot.slane %v592, %v619
    %v621 = vlaneseq
    %v622 = vshrl.u32 %v621, 7
    %v623 = vsub.s32 4, %v622
    %v624 = vrot.slane %v594, %v623
    %v625 = vlaneseq
    %v626 = vshrl.u32 %v625, 7
    %v627 = vsub.s32 4, %v626
    %v628 = vrot.slane %v596, %v627
    %v629 = vmul.f32 %v371, %v600
    %v630 = vmul.f32 %v372, %v604
    %v631 = vmul.f32 %v373, %v608
    %v632 = vmul.f32 %v374, %v612
    %v633 = vmul.f32 %v375, %v616
    %v634 = vmul.f32 %v376, %v620
    %v635 = vmul.f32 %v377, %v624
    %v636 = vmul.f32 %v378, %v628
    %v637 = vmul.f32 %v379, %v600
    %v638 = vmul.f32 %v380, %v604
    %v639 = vmul.f32 %v381, %v608
    %v640 = vmul.f32 %v382, %v612
    %v641 = vmul.f32 %v383, %v616
    %v642 = vmul.f32 %v384, %v620
    %v643 = vmul.f32 %v385, %v624
    %v644 = vmul.f32 %v386, %v628
    %645 = vst [vmem:[#allocation7 + $0x80] sm:$0xff] %v629
    %646 = vst [vmem:[#allocation7 + $0x88] sm:$0xff] %v630
    %647 = vst [vmem:[#allocation7 + $0x90] sm:$0xff] %v631
    %648 = vst [vmem:[#allocation7 + $0x98] sm:$0xff] %v632
    %649 = vst [vmem:[#allocation7 + $0xa0] sm:$0xff] %v633
    %650 = vst [vmem:[#allocation7 + $0xa8] sm:$0xff] %v634
    %651 = vst [vmem:[#allocation7 + $0xb0] sm:$0xff] %v635
    %652 = vst [vmem:[#allocation7 + $0xb8] sm:$0xff] %v636
    %653 = vst [vmem:[#allocation7 + $0xc0] sm:$0xff] %v637
    %654 = vst [vmem:[#allocation7 + $0xc8] sm:$0xff] %v638
    %655 = vst [vmem:[#allocation7 + $0xd0] sm:$0xff] %v639
    %656 = vst [vmem:[#allocation7 + $0xd8] sm:$0xff] %v640
    %657 = vst [vmem:[#allocation7 + $0xe0] sm:$0xff] %v641
    %658 = vst [vmem:[#allocation7 + $0xe8] sm:$0xff] %v642
    %659 = vst [vmem:[#allocation7 + $0xf0] sm:$0xff] %v643
    %660 = vst [vmem:[#allocation7 + $0xf8] sm:$0xff] %v644
    // Predicated region
    $region18: #{tpu_custom_call.1} parent=1 // pred_check
      _
    $region19: #{tpu_custom_call.1} parent=1 // pred_check_branch
      %662 = sbr.rel (0) target = $region21
    $region20: #{tpu_custom_call.1} parent=1 // pred_region
      %s664 = ssub.s32 4096, 4096
      %665 = vsyncadd [#allocation4], %s664
      %s666 = sshll.u32 [#allocation7], 4
      %s667 = int_to_ptr.vmem [resolvable:$true] %s666
      %672 = dma.vmem_to_hbm [thread:$0]  %s667, 4096, %s2, [#allocation4], 1024, 1024, 64
    $region21: #{tpu_custom_call.1} parent=1 // pred_fallthru
      _
    // Predicated region
    $region22: #{tpu_custom_call.1} parent=1 // pred_check
      _
    $region23: #{tpu_custom_call.1} parent=1 // pred_check_branch
      %674 = sbr.rel (0) target = $region25
    $region24: #{tpu_custom_call.1} parent=1 // pred_region
      %675 = dma.done [#allocation4], 4096
    $region25: #{tpu_custom_call.1} parent=1 // pred_fallthru
      _
    %676 = vsyncpa [#allocation3], 1
    %677 = vsyncpa [#allocation6], 1
    %678 = vsyncpa [#allocation4], 1

</llo_original>
